<compile_context>
chip_gen: v7x
topology: tpu7x:2x2x1
jax: 0.10.0
libtpu: 0.0.40
codegen_flags: <defaults>
</compile_context>

<pallas_src>
import functools
import math

import jax
import jax.numpy as jnp
from jax.experimental import pallas as pl
from jax.experimental.pallas import tpu as pltpu


# ---------------- config (small, consistent with the module) ----------------
HIDDEN_SIZE = 32
N_ROUTED_EXPERTS = 16
TOP_K = 4                  # num_experts_per_tok
N_GROUP = 4
TOPK_GROUP = 2
ROUTED_SCALING_FACTOR = 2.5
NORM_TOPK_PROB = True
# scoring_func = 'sigmoid', topk_method = 'noaux_tc'


def _cdiv(a, b):
    return -(-a // b)


def _moe_gate_kernel(x_ref, w_ref, bias_ref, idxcol_ref, out_ref, *,
                     top_k, n_group, topk_group, norm_topk_prob,
                     routed_scaling_factor):
    E = w_ref.shape[0]
    gsize = E // n_group
    NEG = jnp.float32(-jnp.inf)

    # ---- gating matmul (MXU), tokens on lanes: logits^T is (E, TM) ----
    # No explicit cast: wrapper guarantees x and W share a dtype (f32 or bf16);
    # the MXU accumulates in f32 via preferred_element_type.
    logits = jax.lax.dot_general(
        w_ref[...], x_ref[...], dimension_numbers=(((1,), (1,)), ((), ())),
        preferred_element_type=jnp.float32)                 # (E, TM)
    scores = jax.nn.sigmoid(logits)                         # (E, TM), permuted rows
    sfc = scores + bias_ref[...]                            # (E,1) broadcasts over lanes
    idx_col = idxcol_ref[...]                               # (E,1) original expert ids

    # ---- per-group top-2 sum on stacked (n_group, TM) member slabs ----
    # Rows are member-major (permuted in the wrapper): rows
    # [m*n_group:(m+1)*n_group] hold member m of every group, so each slab is
    # a contiguous sublane slice and the phase runs at n_group-sublane
    # occupancy instead of (1, TM) rows.
    mem = [sfc[m * n_group:(m + 1) * n_group, :] for m in range(gsize)]
    if gsize == 4:
        a, b, c, d = mem
        hi1, lo1 = jnp.maximum(a, b), jnp.minimum(a, b)
        hi2, lo2 = jnp.maximum(c, d), jnp.minimum(c, d)
        first = jnp.maximum(hi1, hi2)
        second = jnp.maximum(jnp.minimum(hi1, hi2),
                             jnp.where(hi1 >= hi2, lo1, lo2))
        gscores = first + second                            # (n_group, TM)
    else:
        m1 = mem[0]
        for t in mem[1:]:
            m1 = jnp.maximum(m1, t)
        m2 = jnp.full_like(m1, NEG)
        taken = jnp.zeros_like(m1, dtype=jnp.bool_)
        for t in mem:
            is_first = jnp.logical_and(t == m1, jnp.logical_not(taken))
            m2 = jnp.maximum(m2, jnp.where(is_first, NEG, t))
            taken = jnp.logical_or(taken, is_first)
        gscores = m1 + m2

    # ---- pick topk_group groups per token (lowest group index wins ties) ----
    gid = jax.lax.broadcasted_iota(jnp.int32, gscores.shape, 0)
    work_g = gscores
    sel_g = jnp.zeros(gscores.shape, jnp.float32)
    for _ in range(topk_group):
        gmax = jnp.max(work_g, axis=0, keepdims=True)
        gfirst = jnp.min(jnp.where(work_g == gmax, gid, n_group),
                         axis=0, keepdims=True)
        ghit = gid == gfirst
        sel_g = jnp.where(ghit, jnp.float32(1.0), sel_g)
        work_g = jnp.where(ghit, NEG, work_g)

    # ---- masked_fill(~score_mask, 0.0): repeat the group mask over members ----
    mask_e = jnp.concatenate([sel_g] * gsize, axis=0) > jnp.float32(0.5)  # (E, TM)
    work_e = jnp.where(mask_e, sfc, jnp.float32(0.0))

    # ---- top_k over experts; weights gathered from the ORIGINAL scores ----
    # Tie-break on the smallest ORIGINAL expert index (matches torch/jax topk).
    # TODO(synk): equality-based argmax is NaN-unsafe (inherited from the
    # reference formulation); NaN logits would emit index==E with weight 0.
    idx_rows = []
    w_rows = []
    for _ in range(top_k):
        emax = jnp.max(work_e, axis=0, keepdims=True)                      # (1, TM)
        sel = jnp.min(jnp.where(work_e == emax, idx_col, E),
                      axis=0, keepdims=True)                               # (1, TM)
        hit = idx_col == sel                                               # (E, TM)
        idx_rows.append(sel)
        w_rows.append(jnp.sum(jnp.where(hit, scores, jnp.float32(0.0)),
                              axis=0, keepdims=True))
        work_e = jnp.where(hit, NEG, work_e)

    idx_stack = jnp.concatenate(idx_rows, axis=0)                          # (top_k, TM)
    w_stack = jnp.concatenate(w_rows, axis=0)                              # (top_k, TM)

    scale = jnp.float32(routed_scaling_factor)
    if top_k > 1 and norm_topk_prob:
        denom = jnp.sum(w_stack, axis=0, keepdims=True) + jnp.float32(1e-20)
        scale = scale / denom                                              # (1, TM)
    w_stack = w_stack * scale

    # ---- single full-vreg (2*top_k = 8 sublanes) lane-dense store ----
    # Rows [0, top_k) = int32 indices; rows [top_k, 2*top_k) = bitcast f32 weights.
    packed = jnp.concatenate([idx_stack, pltpu.bitcast(w_stack, jnp.int32)],
                             axis=0)
    out_ref[...] = packed


def _pick_token_tile(T, token_tile):
    """Lane-aligned token tile; >=2 grid steps when possible (v7x dual-TC)."""
    if T < 256:
        return _cdiv(T, 8) * 8                     # tiny: one padded step
    nsteps = max(2, _cdiv(T, token_tile))
    return min(token_tile, _cdiv(_cdiv(T, nsteps), 128) * 128)


def moe_gate(hidden_states, weight, e_score_correction_bias, *,
             token_tile=4096, lane_major=False):
    """hidden_states: (B, S, H); weight: (E, H); bias: (E,).

    Returns (topk_idx, topk_weight). With lane_major=False (module interface)
    both are (B*S, top_k); with lane_major=True they are returned lane-dense
    as (top_k, B*S) (preferred for expert-major downstream dispatch, avoids
    the transpose's extra HBM traffic). Call under jax.jit so the split /
    bitcast / optional transpose fuse with the kernel output.
    """
    B, S, H = hidden_states.shape
    T = B * S
    E = weight.shape[0]
    assert E % N_GROUP == 0
    assert token_tile % 128 == 0
    gsize = E // N_GROUP

    x2d = hidden_states.reshape(T, H)
    # Module semantics: f32 gating matmul. For bf16 activations we take the
    # native bf16 MXU path instead (tiny numeric delta near exact ties).
    if x2d.dtype == jnp.bfloat16:
        w = weight.astype(jnp.bfloat16)
    else:
        x2d = x2d.astype(jnp.float32)
        w = weight.astype(jnp.float32)

    # Member-major row permutation: permuted row p = m*N_GROUP + g holds the
    # original expert e = g*gsize + m, so member slabs are contiguous sublanes.
    perm = [g * gsize + m for m in range(gsize) for g in range(N_GROUP)]
    perm = jnp.asarray(perm, dtype=jnp.int32)
    w_p = jnp.take(w, perm, axis=0)                                   # (E, H)
    bias_p = jnp.take(e_score_correction_bias.astype(jnp.float32),
                      perm).reshape(E, 1)                             # (E, 1)
    idx_col = perm.reshape(E, 1)                                      # (E, 1)

    # Token tile: big tiles amortize the ~0.35us/grid-step overhead; pad ragged
    # token counts to a whole number of tiles and slice the outputs back.
    TM = _pick_token_tile(T, token_tile)
    T_pad = _cdiv(T, TM) * TM
    if T_pad != T:
        x2d = jnp.pad(x2d, ((0, T_pad - T), (0, 0)))

    kernel = functools.partial(
        _moe_gate_kernel,
        top_k=TOP_K, n_group=N_GROUP, topk_group=TOPK_GROUP,
        norm_topk_prob=NORM_TOPK_PROB,
        routed_scaling_factor=ROUTED_SCALING_FACTOR)

    cost = pl.CostEstimate(
        flops=2 * T_pad * E * H,
        transcendentals=T_pad * E,
        bytes_accessed=(T_pad * H * x2d.dtype.itemsize
                        + E * (H + 2) * 4
                        + 2 * TOP_K * T_pad * 4))

    packed = pl.pallas_call(
        kernel,
        out_shape=jax.ShapeDtypeStruct((2 * TOP_K, T_pad), jnp.int32),
        grid=(T_pad // TM,),
        in_specs=[
            pl.BlockSpec((TM, H), lambda i: (i, 0)),       # token tile of activations
            pl.BlockSpec((E, H), lambda i: (0, 0)),        # permuted gate weight
            pl.BlockSpec((E, 1), lambda i: (0, 0)),        # permuted correction bias
            pl.BlockSpec((E, 1), lambda i: (0, 0)),        # original expert ids
        ],
        out_specs=pl.BlockSpec((2 * TOP_K, TM), lambda i: (0, i)),
        compiler_params=pltpu.CompilerParams(dimension_semantics=("parallel",)),
        cost_estimate=cost,
    )(x2d, w_p, bias_p, idx_col)

    packed = packed[:, :T]
    idx_t = packed[:TOP_K]                                            # (top_k, T) int32
    w_t = jax.lax.bitcast_convert_type(packed[TOP_K:], jnp.float32)   # (top_k, T) f32
    if lane_major:
        return idx_t, w_t
    return idx_t.T, w_t.T


def _reference(hidden_states, weight, bias):
    """Pure-JAX reference mirroring the PyTorch forward."""
    B, S, H = hidden_states.shape
    x = hidden_states.reshape(-1, H).astype(jnp.float32)
    logits = x @ weight.astype(jnp.float32).T
    scores = jax.nn.sigmoid(logits)
    sfc = scores + bias[None, :]
    T, E = sfc.shape
    grp = sfc.reshape(T, N_GROUP, E // N_GROUP)
    group_scores = jnp.sum(jax.lax.top_k(grp, 2)[0], axis=-1)
    gidx = jax.lax.top_k(group_scores, TOPK_GROUP)[1]
    gmask = jnp.zeros_like(group_scores).at[jnp.arange(T)[:, None], gidx].set(1.0)
    smask = jnp.repeat(gmask, E // N_GROUP, axis=1)
    tmp = jnp.where(smask > 0, sfc, 0.0)
    topk_idx = jax.lax.top_k(tmp, TOP_K)[1]
    topk_w = jnp.take_along_axis(scores, topk_idx, axis=1)
    if TOP_K > 1 and NORM_TOPK_PROB:
        topk_w = topk_w / (jnp.sum(topk_w, axis=-1, keepdims=True) + 1e-20)
    return topk_idx.astype(jnp.int32), topk_w * ROUTED_SCALING_FACTOR


def _check(hs, weight, bias, gate):
    T = hs.shape[0] * hs.shape[1]
    topk_idx, topk_w = gate(hs, weight, bias)
    jax.block_until_ready((topk_idx, topk_w))
    ref_idx, ref_w = _reference(hs, weight, bias)
    assert topk_idx.shape == (T, TOP_K) and topk_w.shape == (T, TOP_K)
    assert jnp.array_equal(topk_idx, ref_idx), "topk indices mismatch"
    assert jnp.allclose(topk_w, ref_w, atol=1e-5, rtol=1e-5), "topk weights mismatch"


if __name__ == "__main__":
    key = jax.random.PRNGKey(0)
    kx1, kx2, kx3, kw, kb = jax.random.split(key, 5)

    # kaiming_uniform_(a=sqrt(5)) on (E, H) -> U(-1/sqrt(H), 1/sqrt(H))
    bound = 1.0 / math.sqrt(HIDDEN_SIZE)
    weight = jax.random.uniform(kw, (N_ROUTED_EXPERTS, HIDDEN_SIZE),
                                minval=-bound, maxval=bound, dtype=jnp.float32)

    # Keep the output split / transpose fused with the kernel inside one jit.
    gate = jax.jit(moe_gate)

    # 1) module-default small shapes (B=2, S=8) with zero-initialized bias.
    hs1 = jax.random.normal(kx1, (2, 8, HIDDEN_SIZE), dtype=jnp.float32)
    bias0 = jnp.zeros((N_ROUTED_EXPERTS,), dtype=jnp.float32)
    _check(hs1, weight, bias0, gate)

    # 2) multi-step grid (two token tiles) with a nonzero correction bias.
    hs2 = jax.random.normal(kx2, (2, 256, HIDDEN_SIZE), dtype=jnp.float32)
    bias1 = 0.1 * jax.random.normal(kb, (N_ROUTED_EXPERTS,), dtype=jnp.float32)
    _check(hs2, weight, bias1, gate)

    # 3) ragged token count exercising the padding / tail path.
    hs3 = jax.random.normal(kx3, (3, 100, HIDDEN_SIZE), dtype=jnp.float32)
    _check(hs3, weight, bias1, gate)

    print("KERNEL_OK")
</pallas_src>

<mosaic_0001>
module attributes {stable_mosaic.version = 11 : i64} {
  func.func @_moe_gate_kernel(%arg0: i32, %arg1: memref<16x32xf32, #tpu.memory_space<vmem>>, %arg2: memref<16x32xf32, #tpu.memory_space<vmem>>, %arg3: memref<16x1xf32, #tpu.memory_space<vmem>>, %arg4: memref<16x1xi32, #tpu.memory_space<vmem>>, %arg5: memref<8x16xi32, #tpu.memory_space<vmem>>) attributes {dimension_semantics = [#tpu.dimension_semantics<parallel>], iteration_bounds = array<i64: 1>, scalar_prefetch = 0 : i64, scratch_operands = 0 : i64, tpu.core_type = #tpu.core_type<tc>, window_params = [{transform_indices = @transform_0, window_bounds = array<i64: 16, 32>}, {pipeline_mode = #tpu.pipeline_mode<synchronous>, transform_indices = @transform_1, window_bounds = array<i64: 16, 32>}, {pipeline_mode = #tpu.pipeline_mode<synchronous>, transform_indices = @transform_2, window_bounds = array<i64: 16, 1>}, {pipeline_mode = #tpu.pipeline_mode<synchronous>, transform_indices = @transform_3, window_bounds = array<i64: 16, 1>}, {transform_indices = @transform_4, window_bounds = array<i64: 8, 16>}]} {
    %c0 = arith.constant 0 : index
    %c0_0 = arith.constant 0 : index
    %0 = vector.load %arg2[%c0, %c0_0] : memref<16x32xf32, #tpu.memory_space<vmem>>, vector<16x32xf32>
    %c0_1 = arith.constant 0 : index
    %c0_2 = arith.constant 0 : index
    %1 = vector.load %arg1[%c0_1, %c0_2] : memref<16x32xf32, #tpu.memory_space<vmem>>, vector<16x32xf32>
    %cst = arith.constant dense<0.000000e+00> : vector<16x16xf32>
    %2 = tpu.matmul %0, %1, %cst {dimension_numbers = #tpu.dot_dimension_numbers<[1], [1], [0], [0], [0, 0, 1, 0], [], []>} : vector<16x32xf32>, vector<16x32xf32>, vector<16x16xf32> -> vector<16x16xf32>
    %3 = arith.negf %2 : vector<16x16xf32>
    %4 = math.exp %3 : vector<16x16xf32>
    %cst_3 = arith.constant 1.000000e+00 : f32
    %5 = vector.broadcast %cst_3 : f32 to vector<16x16xf32>
    %6 = arith.addf %5, %4 : vector<16x16xf32>
    %7 = arith.divf %5, %6 : vector<16x16xf32>
    %c0_4 = arith.constant 0 : index
    %c0_5 = arith.constant 0 : index
    %8 = vector.load %arg3[%c0_4, %c0_5] : memref<16x1xf32, #tpu.memory_space<vmem>>, vector<16x1xf32>
    %9 = vector.broadcast %8 : vector<16x1xf32> to vector<16x16xf32>
    %10 = arith.addf %7, %9 : vector<16x16xf32>
    %c0_6 = arith.constant 0 : index
    %c0_7 = arith.constant 0 : index
    %11 = vector.load %arg4[%c0_6, %c0_7] : memref<16x1xi32, #tpu.memory_space<vmem>>, vector<16x1xi32>
    %12 = vector.extract_strided_slice %10 {offsets = [0, 0], sizes = [4, 16], strides = [1, 1]} : vector<16x16xf32> to vector<4x16xf32>
    %13 = vector.extract_strided_slice %10 {offsets = [4, 0], sizes = [4, 16], strides = [1, 1]} : vector<16x16xf32> to vector<4x16xf32>
    %14 = vector.extract_strided_slice %10 {offsets = [8, 0], sizes = [4, 16], strides = [1, 1]} : vector<16x16xf32> to vector<4x16xf32>
    %15 = vector.extract_strided_slice %10 {offsets = [12, 0], sizes = [4, 16], strides = [1, 1]} : vector<16x16xf32> to vector<4x16xf32>
    %16 = arith.maximumf %12, %13 : vector<4x16xf32>
    %17 = arith.minimumf %12, %13 : vector<4x16xf32>
    %18 = arith.maximumf %14, %15 : vector<4x16xf32>
    %19 = arith.minimumf %14, %15 : vector<4x16xf32>
    %20 = arith.maximumf %16, %18 : vector<4x16xf32>
    %21 = arith.minimumf %16, %18 : vector<4x16xf32>
    %22 = arith.cmpf oge, %16, %18 : vector<4x16xf32>
    %23 = arith.select %22, %17, %19 : vector<4x16xi1>, vector<4x16xf32>
    %24 = arith.maximumf %21, %23 : vector<4x16xf32>
    %25 = arith.addf %20, %24 : vector<4x16xf32>
    %26 = tpu.iota {dimensions = array<i32: 0>} : vector<4x16xi32>
    %cst_8 = arith.constant 0.000000e+00 : f32
    %27 = vector.broadcast %cst_8 : f32 to vector<4x16xf32>
    %cst_9 = arith.constant dense<0xFF800000> : vector<16xf32>
    %28 = vector.multi_reduction <maximumf>, %25, %cst_9 [0] : vector<4x16xf32> to vector<16xf32>
    %29 = vector.shape_cast %28 : vector<16xf32> to vector<1x16xf32>
    %30 = vector.broadcast %29 : vector<1x16xf32> to vector<4x16xf32>
    %31 = arith.cmpf oeq, %25, %30 : vector<4x16xf32>
    %c4_i32 = arith.constant 4 : i32
    %32 = vector.broadcast %c4_i32 : i32 to vector<4x16xi32>
    %33 = arith.select %31, %26, %32 : vector<4x16xi1>, vector<4x16xi32>
    %cst_10 = arith.constant dense<2147483647> : vector<16xi32>
    %34 = vector.multi_reduction <minsi>, %33, %cst_10 [0] : vector<4x16xi32> to vector<16xi32>
    %35 = vector.shape_cast %34 : vector<16xi32> to vector<1x16xi32>
    %36 = vector.broadcast %35 : vector<1x16xi32> to vector<4x16xi32>
    %37 = arith.cmpi eq, %26, %36 : vector<4x16xi32>
    %cst_11 = arith.constant 1.000000e+00 : f32
    %38 = vector.broadcast %cst_11 : f32 to vector<4x16xf32>
    %39 = arith.select %37, %38, %27 : vector<4x16xi1>, vector<4x16xf32>
    %cst_12 = arith.constant 0xFF800000 : f32
    %40 = vector.broadcast %cst_12 : f32 to vector<4x16xf32>
    %41 = arith.select %37, %40, %25 : vector<4x16xi1>, vector<4x16xf32>
    %cst_13 = arith.constant dense<0xFF800000> : vector<16xf32>
    %42 = vector.multi_reduction <maximumf>, %41, %cst_13 [0] : vector<4x16xf32> to vector<16xf32>
    %43 = vector.shape_cast %42 : vector<16xf32> to vector<1x16xf32>
    %44 = vector.broadcast %43 : vector<1x16xf32> to vector<4x16xf32>
    %45 = arith.cmpf oeq, %41, %44 : vector<4x16xf32>
    %c4_i32_14 = arith.constant 4 : i32
    %46 = vector.broadcast %c4_i32_14 : i32 to vector<4x16xi32>
    %47 = arith.select %45, %26, %46 : vector<4x16xi1>, vector<4x16xi32>
    %cst_15 = arith.constant dense<2147483647> : vector<16xi32>
    %48 = vector.multi_reduction <minsi>, %47, %cst_15 [0] : vector<4x16xi32> to vector<16xi32>
    %49 = vector.shape_cast %48 : vector<16xi32> to vector<1x16xi32>
    %50 = vector.broadcast %49 : vector<1x16xi32> to vector<4x16xi32>
    %51 = arith.cmpi eq, %26, %50 : vector<4x16xi32>
    %cst_16 = arith.constant 1.000000e+00 : f32
    %52 = vector.broadcast %cst_16 : f32 to vector<4x16xf32>
    %53 = arith.select %51, %52, %39 : vector<4x16xi1>, vector<4x16xf32>
    %54 = tpu.concatenate %53, %53, %53, %53 in 0 : vector<4x16xf32>, vector<4x16xf32>, vector<4x16xf32>, vector<4x16xf32> -> vector<16x16xf32>
    %cst_17 = arith.constant 5.000000e-01 : f32
    %55 = vector.broadcast %cst_17 : f32 to vector<16x16xf32>
    %56 = arith.cmpf ogt, %54, %55 : vector<16x16xf32>
    %cst_18 = arith.constant 0.000000e+00 : f32
    %57 = vector.broadcast %cst_18 : f32 to vector<16x16xf32>
    %58 = arith.select %56, %10, %57 : vector<16x16xi1>, vector<16x16xf32>
    %cst_19 = arith.constant dense<0xFF800000> : vector<16xf32>
    %59 = vector.multi_reduction <maximumf>, %58, %cst_19 [0] : vector<16x16xf32> to vector<16xf32>
    %60 = vector.shape_cast %59 : vector<16xf32> to vector<1x16xf32>
    %61 = vector.broadcast %60 : vector<1x16xf32> to vector<16x16xf32>
    %62 = arith.cmpf oeq, %58, %61 : vector<16x16xf32>
    %c16_i32 = arith.constant 16 : i32
    %63 = vector.shape_cast %11 : vector<16x1xi32> to vector<16x1xi32>
    %64 = vector.broadcast %63 : vector<16x1xi32> to vector<16x16xi32>
    %65 = vector.broadcast %c16_i32 : i32 to vector<16x16xi32>
    %66 = arith.select %62, %64, %65 : vector<16x16xi1>, vector<16x16xi32>
    %cst_20 = arith.constant dense<2147483647> : vector<16xi32>
    %67 = vector.multi_reduction <minsi>, %66, %cst_20 [0] : vector<16x16xi32> to vector<16xi32>
    %68 = vector.shape_cast %67 : vector<16xi32> to vector<1x16xi32>
    %69 = vector.broadcast %11 : vector<16x1xi32> to vector<16x16xi32>
    %70 = vector.broadcast %68 : vector<1x16xi32> to vector<16x16xi32>
    %71 = arith.cmpi eq, %69, %70 : vector<16x16xi32>
    %cst_21 = arith.constant 0.000000e+00 : f32
    %72 = vector.broadcast %cst_21 : f32 to vector<16x16xf32>
    %73 = arith.select %71, %7, %72 : vector<16x16xi1>, vector<16x16xf32>
    %cst_22 = arith.constant dense<0.000000e+00> : vector<16xf32>
    %74 = vector.multi_reduction <add>, %73, %cst_22 [0] : vector<16x16xf32> to vector<16xf32>
    %75 = vector.shape_cast %74 : vector<16xf32> to vector<1x16xf32>
    %cst_23 = arith.constant 0xFF800000 : f32
    %76 = vector.broadcast %cst_23 : f32 to vector<16x16xf32>
    %77 = arith.select %71, %76, %58 : vector<16x16xi1>, vector<16x16xf32>
    %cst_24 = arith.constant dense<0xFF800000> : vector<16xf32>
    %78 = vector.multi_reduction <maximumf>, %77, %cst_24 [0] : vector<16x16xf32> to vector<16xf32>
    %79 = vector.shape_cast %78 : vector<16xf32> to vector<1x16xf32>
    %80 = vector.broadcast %79 : vector<1x16xf32> to vector<16x16xf32>
    %81 = arith.cmpf oeq, %77, %80 : vector<16x16xf32>
    %c16_i32_25 = arith.constant 16 : i32
    %82 = vector.shape_cast %11 : vector<16x1xi32> to vector<16x1xi32>
    %83 = vector.broadcast %82 : vector<16x1xi32> to vector<16x16xi32>
    %84 = vector.broadcast %c16_i32_25 : i32 to vector<16x16xi32>
    %85 = arith.select %81, %83, %84 : vector<16x16xi1>, vector<16x16xi32>
    %cst_26 = arith.constant dense<2147483647> : vector<16xi32>
    %86 = vector.multi_reduction <minsi>, %85, %cst_26 [0] : vector<16x16xi32> to vector<16xi32>
    %87 = vector.shape_cast %86 : vector<16xi32> to vector<1x16xi32>
    %88 = vector.broadcast %11 : vector<16x1xi32> to vector<16x16xi32>
    %89 = vector.broadcast %87 : vector<1x16xi32> to vector<16x16xi32>
    %90 = arith.cmpi eq, %88, %89 : vector<16x16xi32>
    %cst_27 = arith.constant 0.000000e+00 : f32
    %91 = vector.broadcast %cst_27 : f32 to vector<16x16xf32>
    %92 = arith.select %90, %7, %91 : vector<16x16xi1>, vector<16x16xf32>
    %cst_28 = arith.constant dense<0.000000e+00> : vector<16xf32>
    %93 = vector.multi_reduction <add>, %92, %cst_28 [0] : vector<16x16xf32> to vector<16xf32>
    %94 = vector.shape_cast %93 : vector<16xf32> to vector<1x16xf32>
    %cst_29 = arith.constant 0xFF800000 : f32
    %95 = vector.broadcast %cst_29 : f32 to vector<16x16xf32>
    %96 = arith.select %90, %95, %77 : vector<16x16xi1>, vector<16x16xf32>
    %cst_30 = arith.constant dense<0xFF800000> : vector<16xf32>
    %97 = vector.multi_reduction <maximumf>, %96, %cst_30 [0] : vector<16x16xf32> to vector<16xf32>
    %98 = vector.shape_cast %97 : vector<16xf32> to vector<1x16xf32>
    %99 = vector.broadcast %98 : vector<1x16xf32> to vector<16x16xf32>
    %100 = arith.cmpf oeq, %96, %99 : vector<16x16xf32>
    %c16_i32_31 = arith.constant 16 : i32
    %101 = vector.shape_cast %11 : vector<16x1xi32> to vector<16x1xi32>
    %102 = vector.broadcast %101 : vector<16x1xi32> to vector<16x16xi32>
    %103 = vector.broadcast %c16_i32_31 : i32 to vector<16x16xi32>
    %104 = arith.select %100, %102, %103 : vector<16x16xi1>, vector<16x16xi32>
    %cst_32 = arith.constant dense<2147483647> : vector<16xi32>
    %105 = vector.multi_reduction <minsi>, %104, %cst_32 [0] : vector<16x16xi32> to vector<16xi32>
    %106 = vector.shape_cast %105 : vector<16xi32> to vector<1x16xi32>
    %107 = vector.broadcast %11 : vector<16x1xi32> to vector<16x16xi32>
    %108 = vector.broadcast %106 : vector<1x16xi32> to vector<16x16xi32>
    %109 = arith.cmpi eq, %107, %108 : vector<16x16xi32>
    %cst_33 = arith.constant 0.000000e+00 : f32
    %110 = vector.broadcast %cst_33 : f32 to vector<16x16xf32>
    %111 = arith.select %109, %7, %110 : vector<16x16xi1>, vector<16x16xf32>
    %cst_34 = arith.constant dense<0.000000e+00> : vector<16xf32>
    %112 = vector.multi_reduction <add>, %111, %cst_34 [0] : vector<16x16xf32> to vector<16xf32>
    %113 = vector.shape_cast %112 : vector<16xf32> to vector<1x16xf32>
    %cst_35 = arith.constant 0xFF800000 : f32
    %114 = vector.broadcast %cst_35 : f32 to vector<16x16xf32>
    %115 = arith.select %109, %114, %96 : vector<16x16xi1>, vector<16x16xf32>
    %cst_36 = arith.constant dense<0xFF800000> : vector<16xf32>
    %116 = vector.multi_reduction <maximumf>, %115, %cst_36 [0] : vector<16x16xf32> to vector<16xf32>
    %117 = vector.shape_cast %116 : vector<16xf32> to vector<1x16xf32>
    %118 = vector.broadcast %117 : vector<1x16xf32> to vector<16x16xf32>
    %119 = arith.cmpf oeq, %115, %118 : vector<16x16xf32>
    %c16_i32_37 = arith.constant 16 : i32
    %120 = vector.shape_cast %11 : vector<16x1xi32> to vector<16x1xi32>
    %121 = vector.broadcast %120 : vector<16x1xi32> to vector<16x16xi32>
    %122 = vector.broadcast %c16_i32_37 : i32 to vector<16x16xi32>
    %123 = arith.select %119, %121, %122 : vector<16x16xi1>, vector<16x16xi32>
    %cst_38 = arith.constant dense<2147483647> : vector<16xi32>
    %124 = vector.multi_reduction <minsi>, %123, %cst_38 [0] : vector<16x16xi32> to vector<16xi32>
    %125 = vector.shape_cast %124 : vector<16xi32> to vector<1x16xi32>
    %126 = vector.broadcast %11 : vector<16x1xi32> to vector<16x16xi32>
    %127 = vector.broadcast %125 : vector<1x16xi32> to vector<16x16xi32>
    %128 = arith.cmpi eq, %126, %127 : vector<16x16xi32>
    %cst_39 = arith.constant 0.000000e+00 : f32
    %129 = vector.broadcast %cst_39 : f32 to vector<16x16xf32>
    %130 = arith.select %128, %7, %129 : vector<16x16xi1>, vector<16x16xf32>
    %cst_40 = arith.constant dense<0.000000e+00> : vector<16xf32>
    %131 = vector.multi_reduction <add>, %130, %cst_40 [0] : vector<16x16xf32> to vector<16xf32>
    %132 = vector.shape_cast %131 : vector<16xf32> to vector<1x16xf32>
    %133 = tpu.concatenate %68, %87, %106, %125 in 0 : vector<1x16xi32>, vector<1x16xi32>, vector<1x16xi32>, vector<1x16xi32> -> vector<4x16xi32>
    %134 = tpu.concatenate %75, %94, %113, %132 in 0 : vector<1x16xf32>, vector<1x16xf32>, vector<1x16xf32>, vector<1x16xf32> -> vector<4x16xf32>
    %cst_41 = arith.constant dense<0.000000e+00> : vector<16xf32>
    %135 = vector.multi_reduction <add>, %134, %cst_41 [0] : vector<4x16xf32> to vector<16xf32>
    %136 = vector.shape_cast %135 : vector<16xf32> to vector<1x16xf32>
    %cst_42 = arith.constant 9.99999968E-21 : f32
    %137 = vector.broadcast %cst_42 : f32 to vector<1x16xf32>
    %138 = arith.addf %136, %137 : vector<1x16xf32>
    %cst_43 = arith.constant 2.500000e+00 : f32
    %139 = vector.broadcast %cst_43 : f32 to vector<1x16xf32>
    %140 = arith.divf %139, %138 : vector<1x16xf32>
    %141 = vector.broadcast %140 : vector<1x16xf32> to vector<4x16xf32>
    %142 = arith.mulf %134, %141 : vector<4x16xf32>
    %143 = tpu.bitcast %142 : vector<4x16xf32> -> vector<4x16xi32>
    %144 = tpu.concatenate %133, %143 in 0 : vector<4x16xi32>, vector<4x16xi32> -> vector<8x16xi32>
    %c0_44 = arith.constant 0 : index
    %c0_45 = arith.constant 0 : index
    %145 = vector.load %arg5[%c0_44, %c0_45] : memref<8x16xi32, #tpu.memory_space<vmem>>, vector<8x16xi32>
    tpu.vector_store %arg5[%c0_44, %c0_45], %144 {strides = array<i32>} : memref<8x16xi32, #tpu.memory_space<vmem>>, vector<8x16xi32>,
    return
  }
  func.func @transform_0(%arg0: i32) -> (i32, i32) {
    %c0_i32 = arith.constant 0 : i32
    %c0_i32_0 = arith.constant 0 : i32
    return %arg0, %c0_i32 : i32, i32
  }
  func.func @transform_1(%arg0: i32) -> (i32, i32) {
    %c0_i32 = arith.constant 0 : i32
    %c0_i32_0 = arith.constant 0 : i32
    %c0_i32_1 = arith.constant 0 : i32
    return %c0_i32, %c0_i32_0 : i32, i32
  }
  func.func @transform_2(%arg0: i32) -> (i32, i32) {
    %c0_i32 = arith.constant 0 : i32
    %c0_i32_0 = arith.constant 0 : i32
    %c0_i32_1 = arith.constant 0 : i32
    return %c0_i32, %c0_i32_0 : i32, i32
  }
  func.func @transform_3(%arg0: i32) -> (i32, i32) {
    %c0_i32 = arith.constant 0 : i32
    %c0_i32_0 = arith.constant 0 : i32
    %c0_i32_1 = arith.constant 0 : i32
    return %c0_i32, %c0_i32_0 : i32, i32
  }
  func.func @transform_4(%arg0: i32) -> (i32, i32) {
    %c0_i32 = arith.constant 0 : i32
    %c0_i32_0 = arith.constant 0 : i32
    return %c0_i32, %arg0 : i32, i32
  }
}

</mosaic_0001>

<llo_original>
// kernel: moe_gate.1
$region0: #{moe_gate.1}
  #allocation0 [shape = 'u32[]', space=smem, size = 0x4, offset = 0x4, fixed_abs, tag = 'smem constant byte address 0x4 - core index']
  #allocation1 [shape = 'u32[144,128]{1,0:T(1,128)}', space=vmem, size = 0x12000, scoped, tag = 'internal scratch']
  %s0 = inlined_call_operand.vmem [shape: f32[16,32], index: 0, kind: input, shape index: {}]
  %s1 = inlined_call_operand.vmem [shape: f32[16,32], index: 1, kind: input, shape index: {}]
  %s2 = inlined_call_operand.vmem [shape: f32[16,1], index: 2, kind: input, shape index: {}]
  %s3 = inlined_call_operand.vmem [shape: s32[16,1], index: 3, kind: input, shape index: {}]
  %s4 = inlined_call_operand.vmem [shape: s32[8,16], index: 4, kind: output, shape index: {}]
  %s5 = sld [smem:[#allocation0]]
  $region26: #{moe_gate.1} parent=0
    _
  %s7 = ssub.s32 1, %s5
  %s8 = scalar_select 0, %s7, %s5
  // Predicated region
  $region2: #{moe_gate.1} parent=0 // pred_check
    _
  $region3: #{moe_gate.1} parent=0 // pred_check_branch
    %10 = sbr.rel (0) target = $region5
  $region4: #{moe_gate.1} parent=0 // pred_region
    _
  $region5: #{moe_gate.1} parent=0 // pred_fallthru
    _
  // Predicated region
  $region6: #{moe_gate.1} parent=0 // pred_check
    _
  $region7: #{moe_gate.1} parent=0 // pred_check_branch
    %12 = sbr.rel (0) target = $region9
  $region8: #{moe_gate.1} parent=0 // pred_region
    _
  $region9: #{moe_gate.1} parent=0 // pred_fallthru
    _
  // Predicated region
  $region10: #{moe_gate.1} parent=0 // pred_check
    _
  $region11: #{moe_gate.1} parent=0 // pred_check_branch
    %14 = sbr.rel (0) target = $region13
  $region12: #{moe_gate.1} parent=0 // pred_region
    _
  $region13: #{moe_gate.1} parent=0 // pred_fallthru
    _
  // Predicated region
  $region14: #{moe_gate.1} parent=0 // pred_check
    _
  $region15: #{moe_gate.1} parent=0 // pred_check_branch
    %16 = sbr.rel (0) target = $region17
  $region16: #{moe_gate.1} parent=0 // pred_region
    _
  $region17: #{moe_gate.1} parent=0 // pred_fallthru
    _
  %v17 = vld [vmem:[%s1] sm:$0xff]
  %v18 = vld [vmem:[%s1 + $0x8] sm:$0xff]
  %v19 = vld [vmem:[%s0] sm:$0xff]
  %v20 = vld [vmem:[%s0 + $0x8] sm:$0xff]
  %vm21 = vcmask 261120
  %v23 = vsel %vm21, %v17, 0
  %v26 = vsel %vm21, %v18, 0
  %v29 = vsel %vm21, %v19, 0
  %v32 = vsel %vm21, %v20, 0
  %34 = vmatprep.subr.mxu0 0.0
  %35 = vmatpush1.xpose.msra.mxu0 %v29
  %36 = vmatprep.subr.mxu0 0.0
  %37 = vmatpush1.xpose.msra.mxu0 %v32
  %38 = vmatprep.subr.mxu0 0.0
  %39 = vmatpush1.xpose.msra.mxu0 0.0
  %40 = vmatprep.subr.mxu0 0.0
  %41 = vmatpush1.xpose.msra.mxu0 0.0
  %42 = vmatprep.subr.mxu0 0.0
  %43 = vmatpush1.xpose.msra.mxu0 0.0
  %44 = vmatprep.subr.mxu0 0.0
  %45 = vmatpush1.xpose.msra.mxu0 0.0
  %46 = vmatprep.subr.mxu0 0.0
  %47 = vmatpush1.xpose.msra.mxu0 0.0
  %48 = vmatprep.subr.mxu0 0.0
  %49 = vmatpush1.xpose.msra.mxu0 0.0
  %50 = vmatprep.subr.mxu0 0.0
  %51 = vmatpush1.xpose.msra.mxu0 0.0
  %52 = vmatprep.subr.mxu0 0.0
  %53 = vmatpush1.xpose.msra.mxu0 0.0
  %54 = vmatprep.subr.mxu0 0.0
  %55 = vmatpush1.xpose.msra.mxu0 0.0
  %56 = vmatprep.subr.mxu0 0.0
  %57 = vmatpush1.xpose.msra.mxu0 0.0
  %58 = vmatprep.subr.mxu0 0.0
  %59 = vmatpush1.xpose.msra.mxu0 0.0
  %60 = vmatprep.subr.mxu0 0.0
  %61 = vmatpush1.xpose.msra.mxu0 0.0
  %62 = vmatprep.subr.mxu0 0.0
  %63 = vmatpush1.xpose.msra.mxu0 0.0
  %64 = vmatprep.subr.mxu0 0.0
  %65 = vmatpush1.xpose.msra.mxu0 0.0
  %66 = vmatprep.subr.mxu0 0.0
  %67 = vmatpush1.xpose.msra.mxu0 0.0
  %68 = vmatprep.subr.mxu0 0.0
  %69 = vmatpush1.xpose.msra.mxu0 0.0
  %70 = vmatprep.subr.mxu0 0.0
  %71 = vmatpush1.xpose.msra.mxu0 0.0
  %72 = vmatprep.subr.mxu0 0.0
  %73 = vmatpush1.xpose.msra.mxu0 0.0
  %74 = vmatprep.subr.mxu0 0.0
  %75 = vmatpush1.xpose.msra.mxu0 0.0
  %76 = vmatprep.subr.mxu0 0.0
  %77 = vmatpush1.xpose.msra.mxu0 0.0
  %78 = vmatprep.subr.mxu0 0.0
  %79 = vmatpush1.xpose.msra.mxu0 0.0
  %80 = vmatprep.subr.mxu0 0.0
  %81 = vmatpush1.xpose.msra.mxu0 0.0
  %82 = vmatprep.subr.mxu0 0.0
  %83 = vmatpush1.xpose.msra.mxu0 0.0
  %84 = vmatprep.subr.mxu0 0.0
  %85 = vmatpush1.xpose.msra.mxu0 0.0
  %86 = vmatprep.subr.mxu0 0.0
  %87 = vmatpush1.xpose.msra.mxu0 0.0
  %88 = vmatprep.subr.mxu0 0.0
  %89 = vmatpush1.xpose.msra.mxu0 0.0
  %90 = vmatprep.subr.mxu0 0.0
  %91 = vmatpush1.xpose.msra.mxu0 0.0
  %92 = vmatprep.subr.mxu0 0.0
  %93 = vmatpush1.xpose.msra.mxu0 0.0
  %94 = vmatprep.subr.mxu0 0.0
  %95 = vmatpush1.xpose.msra.mxu0 0.0
  %96 = vmatprep.subr.mxu0 0.0
  %97 = vmatpush1.xpose.msra.mxu0 0.0
  %98 = vmatprep.mubr.f32.mxu0 0.0
  %99 = vmatmul.mubr.f32.gmra.mrb[0].mxu0 %v23
  %v100 = vpop.f32.mrb[0].mxu0
  %v101 = vadd.f32 0.0, %v100
  %v102 = vpop.f32.mrb[0].mxu0
  %103 = vmatprep.mubr.f32.mxu0 0.0
  %104 = vmatmul.mubr.f32.gmra.mrb[0].mxu0 %v26
  %v105 = vpop.f32.mrb[0].mxu0
  %v106 = vadd.f32 0.0, %v105
  %v107 = vpop.f32.mrb[0].mxu0
  %108 = vdwg.mxu0
  %v109 = vxor.u32 %v101, 2147483648
  %v110 = vxor.u32 %v106, 2147483648
  %v111 = vmul.f32 %v109, 1.442695
  %v112 = vpow.pop %v111
  %v113 = vmul.f32 %v110, 1.442695
  %v114 = vpow.pop %v113
  %v115 = vadd.f32 %v112, 1.0
  %v116 = vadd.f32 %v114, 1.0
  %v117 = vrcp.pop %v115
  %v118 = vmul.f32 1.0, %v117
  %v119 = vrcp.pop %v116
  %v120 = vmul.f32 1.0, %v119
  %v121 = vld [vmem:[%s2] sm:$0xff]
  %v122 = vld [vmem:[%s2 + $0x8] sm:$0xff]
  %124 = vset.pattern.permute.xlu0 0
  %125 = vperm.xlu0 %124, %v121
  %v126 = vpop.permute.xlu0 %125
  %129 = vset.pattern.permute.xlu0 0
  %130 = vperm.xlu0 %129, %v122
  %v131 = vpop.permute.xlu0 %130
  %v133 = vadd.f32 %v118, %v126
  %v134 = vadd.f32 %v120, %v131
  %v135 = vld [vmem:[%s3] sm:$0xff]
  %v136 = vld [vmem:[%s3 + $0x8] sm:$0xff]
  %v138 = vrot.slane %v133, 4
  %v140 = vmax.f32 %v133, %v138
  %v141 = vmin.f32 %v133, %v138
  %v143 = vrot.slane %v134, 4
  %v145 = vmax.f32 %v134, %v143
  %v146 = vmin.f32 %v134, %v143
  %v147 = vmax.f32 %v140, %v145
  %v148 = vmin.f32 %v140, %v145
  %vm149 = vcmp.ge.f32.partialorder %v140, %v145
  %v150 = vsel %vm149, %v141, %v146
  %v151 = vmax.f32 %v148, %v150
  %v152 = vadd.f32 %v147, %v151
  %v153 = vlaneseq
  %v154 = vshrl.u32 %v153, 7
  %vm155 = vcmask 125952
  %v156 = vsel %vm155, %v152, -inf
  %v157 = vrot.slane %v156, 4
  %v158 = vmax.f32 %v156, %v157
  %v159 = vrot.slane %v158, 2
  %v160 = vmax.f32 %v158, %v159
  %v161 = vrot.slane %v160, 1
  %v162 = vmax.f32 %v160, %v161
  %vm163 = vcmp.eq.f32.partialorder %v152, %v162
  %v164 = vsel %vm163, %v154, 4
  %v165 = vsel %vm155, %v164, 2147483647
  %v166 = vrot.slane %v165, 4
  %vm167 = vcmp.lt.s32.totalorder %v165, %v166
  %v168 = vsel %vm167, %v165, %v166
  %v169 = vrot.slane %v168, 2
  %vm170 = vcmp.lt.s32.totalorder %v168, %v169
  %v171 = vsel %vm170, %v168, %v169
  %v172 = vrot.slane %v171, 1
  %vm173 = vcmp.lt.s32.totalorder %v171, %v172
  %v174 = vsel %vm173, %v171, %v172
  %vm175 = vcmp.eq.s32.totalorder %v154, %v174
  %v176 = vsel %vm175, 1.0, 0.0
  %v177 = vsel %vm175, -inf, %v152
  %v178 = vsel %vm155, %v177, -inf
  %v179 = vrot.slane %v178, 4
  %v180 = vmax.f32 %v178, %v179
  %v181 = vrot.slane %v180, 2
  %v182 = vmax.f32 %v180, %v181
  %v183 = vrot.slane %v182, 1
  %v184 = vmax.f32 %v182, %v183
  %vm185 = vcmp.eq.f32.partialorder %v177, %v184
  %v186 = vsel %vm185, %v154, 4
  %v187 = vsel %vm155, %v186, 2147483647
  %v188 = vrot.slane %v187, 4
  %vm189 = vcmp.lt.s32.totalorder %v187, %v188
  %v190 = vsel %vm189, %v187, %v188
  %v191 = vrot.slane %v190, 2
  %vm192 = vcmp.lt.s32.totalorder %v190, %v191
  %v193 = vsel %vm192, %v190, %v191
  %v194 = vrot.slane %v193, 1
  %vm195 = vcmp.lt.s32.totalorder %v193, %v194
  %v196 = vsel %vm195, %v193, %v194
  %vm197 = vcmp.eq.s32.totalorder %v154, %v196
  %v198 = vsel %vm197, 1.0, %v176
  %v200 = vrot.slane %v198, 4
  %vm202 = vcmask 1043456
  %v203 = vsel %vm202, %v198, %v200
  %vm204 = vcmp.gt.f32.partialorder %v203, 0.5
  %v205 = vsel %vm204, %v133, 0.0
  %v206 = vsel %vm204, %v134, 0.0
  %vm207 = vcmask 130048
  %v208 = vsel %vm207, %v205, -inf
  %v209 = vsel %vm207, %v206, -inf
  %v210 = vmax.f32 %v208, %v209
  %v211 = vrot.slane %v210, 4
  %v212 = vmax.f32 %v210, %v211
  %v213 = vrot.slane %v212, 2
  %v214 = vmax.f32 %v212, %v213
  %v215 = vrot.slane %v214, 1
  %v216 = vmax.f32 %v214, %v215
  %vm217 = vcmp.eq.f32.partialorder %v205, %v216
  %vm218 = vcmp.eq.f32.partialorder %v206, %v216
  %219 = vset.pattern.permute.xlu0 0
  %220 = vperm.xlu0 %219, %v135
  %v221 = vpop.permute.xlu0 %220
  %222 = vset.pattern.permute.xlu0 0
  %223 = vperm.xlu0 %222, %v136
  %v224 = vpop.permute.xlu0 %223
  %v225 = vsel %vm217, %v221, 16
  %v226 = vsel %vm218, %v224, 16
  %v227 = vsel %vm207, %v225, 2147483647
  %v228 = vsel %vm207, %v226, 2147483647
  %vm229 = vcmp.lt.s32.totalorder %v227, %v228
  %v230 = vsel %vm229, %v227, %v228
  %v231 = vrot.slane %v230, 4
  %vm232 = vcmp.lt.s32.totalorder %v230, %v231
  %v233 = vsel %vm232, %v230, %v231
  %v234 = vrot.slane %v233, 2
  %vm235 = vcmp.lt.s32.totalorder %v233, %v234
  %v236 = vsel %vm235, %v233, %v234
  %v237 = vrot.slane %v236, 1
  %vm238 = vcmp.lt.s32.totalorder %v236, %v237
  %v239 = vsel %vm238, %v236, %v237
  %vm240 = vcmp.eq.s32.totalorder %v221, %v239
  %vm241 = vcmp.eq.s32.totalorder %v224, %v239
  %v242 = vsel %vm240, %v118, 0.0
  %v243 = vsel %vm241, %v120, 0.0
  %v244 = vsel %vm207, %v242, 0.0
  %v245 = vsel %vm207, %v243, 0.0
  %v246 = vadd.f32 %v244, %v245
  %v247 = vrot.slane %v246, 4
  %v248 = vadd.f32 %v246, %v247
  %v249 = vrot.slane %v248, 2
  %v250 = vadd.f32 %v248, %v249
  %v251 = vrot.slane %v250, 1
  %v252 = vadd.f32 %v250, %v251
  %v253 = vsel %vm240, -inf, %v205
  %v254 = vsel %vm241, -inf, %v206
  %v255 = vsel %vm207, %v253, -inf
  %v256 = vsel %vm207, %v254, -inf
  %v257 = vmax.f32 %v255, %v256
  %v258 = vrot.slane %v257, 4
  %v259 = vmax.f32 %v257, %v258
  %v260 = vrot.slane %v259, 2
  %v261 = vmax.f32 %v259, %v260
  %v262 = vrot.slane %v261, 1
  %v263 = vmax.f32 %v261, %v262
  %vm264 = vcmp.eq.f32.partialorder %v253, %v263
  %vm265 = vcmp.eq.f32.partialorder %v254, %v263
  %v266 = vsel %vm264, %v221, 16
  %v267 = vsel %vm265, %v224, 16
  %v268 = vsel %vm207, %v266, 2147483647
  %v269 = vsel %vm207, %v267, 2147483647
  %vm270 = vcmp.lt.s32.totalorder %v268, %v269
  %v271 = vsel %vm270, %v268, %v269
  %v272 = vrot.slane %v271, 4
  %vm273 = vcmp.lt.s32.totalorder %v271, %v272
  %v274 = vsel %vm273, %v271, %v272
  %v275 = vrot.slane %v274, 2
  %vm276 = vcmp.lt.s32.totalorder %v274, %v275
  %v277 = vsel %vm276, %v274, %v275
  %v278 = vrot.slane %v277, 1
  %vm279 = vcmp.lt.s32.totalorder %v277, %v278
  %v280 = vsel %vm279, %v277, %v278
  %vm281 = vcmp.eq.s32.totalorder %v221, %v280
  %vm282 = vcmp.eq.s32.totalorder %v224, %v280
  %v283 = vsel %vm281, %v118, 0.0
  %v284 = vsel %vm282, %v120, 0.0
  %v285 = vsel %vm207, %v283, 0.0
  %v286 = vsel %vm207, %v284, 0.0
  %v287 = vadd.f32 %v285, %v286
  %v288 = vrot.slane %v287, 4
  %v289 = vadd.f32 %v287, %v288
  %v290 = vrot.slane %v289, 2
  %v291 = vadd.f32 %v289, %v290
  %v292 = vrot.slane %v291, 1
  %v293 = vadd.f32 %v291, %v292
  %v294 = vsel %vm281, -inf, %v253
  %v295 = vsel %vm282, -inf, %v254
  %v296 = vsel %vm207, %v294, -inf
  %v297 = vsel %vm207, %v295, -inf
  %v298 = vmax.f32 %v296, %v297
  %v299 = vrot.slane %v298, 4
  %v300 = vmax.f32 %v298, %v299
  %v301 = vrot.slane %v300, 2
  %v302 = vmax.f32 %v300, %v301
  %v303 = vrot.slane %v302, 1
  %v304 = vmax.f32 %v302, %v303
  %vm305 = vcmp.eq.f32.partialorder %v294, %v304
  %vm306 = vcmp.eq.f32.partialorder %v295, %v304
  %v307 = vsel %vm305, %v221, 16
  %v308 = vsel %vm306, %v224, 16
  %v309 = vsel %vm207, %v307, 2147483647
  %v310 = vsel %vm207, %v308, 2147483647
  %vm311 = vcmp.lt.s32.totalorder %v309, %v310
  %v312 = vsel %vm311, %v309, %v310
  %v313 = vrot.slane %v312, 4
  %vm314 = vcmp.lt.s32.totalorder %v312, %v313
  %v315 = vsel %vm314, %v312, %v313
  %v316 = vrot.slane %v315, 2
  %vm317 = vcmp.lt.s32.totalorder %v315, %v316
  %v318 = vsel %vm317, %v315, %v316
  %v319 = vrot.slane %v318, 1
  %vm320 = vcmp.lt.s32.totalorder %v318, %v319
  %v321 = vsel %vm320, %v318, %v319
  %vm322 = vcmp.eq.s32.totalorder %v221, %v321
  %vm323 = vcmp.eq.s32.totalorder %v224, %v321
  %v324 = vsel %vm322, %v118, 0.0
  %v325 = vsel %vm323, %v120, 0.0
  %v326 = vsel %vm207, %v324, 0.0
  %v327 = vsel %vm207, %v325, 0.0
  %v328 = vadd.f32 %v326, %v327
  %v329 = vrot.slane %v328, 4
  %v330 = vadd.f32 %v328, %v329
  %v331 = vrot.slane %v330, 2
  %v332 = vadd.f32 %v330, %v331
  %v333 = vrot.slane %v332, 1
  %v334 = vadd.f32 %v332, %v333
  %v335 = vsel %vm322, -inf, %v294
  %v336 = vsel %vm323, -inf, %v295
  %v337 = vsel %vm207, %v335, -inf
  %v338 = vsel %vm207, %v336, -inf
  %v339 = vmax.f32 %v337, %v338
  %v340 = vrot.slane %v339, 4
  %v341 = vmax.f32 %v339, %v340
  %v342 = vrot.slane %v341, 2
  %v343 = vmax.f32 %v341, %v342
  %v344 = vrot.slane %v343, 1
  %v345 = vmax.f32 %v343, %v344
  %vm346 = vcmp.eq.f32.partialorder %v335, %v345
  %vm347 = vcmp.eq.f32.partialorder %v336, %v345
  %v348 = vsel %vm346, %v221, 16
  %v349 = vsel %vm347, %v224, 16
  %v350 = vsel %vm207, %v348, 2147483647
  %v351 = vsel %vm207, %v349, 2147483647
  %vm352 = vcmp.lt.s32.totalorder %v350, %v351
  %v353 = vsel %vm352, %v350, %v351
  %v354 = vrot.slane %v353, 4
  %vm355 = vcmp.lt.s32.totalorder %v353, %v354
  %v356 = vsel %vm355, %v353, %v354
  %v357 = vrot.slane %v356, 2
  %vm358 = vcmp.lt.s32.totalorder %v356, %v357
  %v359 = vsel %vm358, %v356, %v357
  %v360 = vrot.slane %v359, 1
  %vm361 = vcmp.lt.s32.totalorder %v359, %v360
  %v362 = vsel %vm361, %v359, %v360
  %vm363 = vcmp.eq.s32.totalorder %v221, %v362
  %vm364 = vcmp.eq.s32.totalorder %v224, %v362
  %v365 = vsel %vm363, %v118, 0.0
  %v366 = vsel %vm364, %v120, 0.0
  %v367 = vsel %vm207, %v365, 0.0
  %v368 = vsel %vm207, %v366, 0.0
  %v369 = vadd.f32 %v367, %v368
  %v370 = vrot.slane %v369, 4
  %v371 = vadd.f32 %v369, %v370
  %v372 = vrot.slane %v371, 2
  %v373 = vadd.f32 %v371, %v372
  %v374 = vrot.slane %v373, 1
  %v375 = vadd.f32 %v373, %v374
  %vm376 = vcmask 1040384
  %v377 = vsel %vm376, %v239, %v280
  %vm378 = vcmask 1041408
  %v379 = vsel %vm378, %v377, %v321
  %vm380 = vcmask 1042432
  %v381 = vsel %vm380, %v379, %v362
  %v382 = vsel %vm376, %v252, %v293
  %v383 = vsel %vm378, %v382, %v334
  %v384 = vsel %vm380, %v383, %v375
  %v385 = vsel %vm155, %v384, 0.0
  %v386 = vrot.slane %v385, 4
  %v387 = vadd.f32 %v385, %v386
  %v388 = vrot.slane %v387, 2
  %v389 = vadd.f32 %v387, %v388
  %v390 = vrot.slane %v389, 1
  %v391 = vadd.f32 %v389, %v390
  %v392 = vadd.f32 %v391, 1e-20
  %v393 = vrcp.pop %v392
  %v394 = vmul.f32 2.5, %v393
  %v395 = vmul.f32 %v384, %v394
  %v397 = vrot.slane %v395, 4
  %v398 = vsel %vm202, %v381, %v397
  %399 = vst.msk [vmem:[%s4] sm:$0xff] %vm207, %v398
  // Predicated region
  $region18: #{moe_gate.1} parent=0 // pred_check
    _
  $region19: #{moe_gate.1} parent=0 // pred_check_branch
    %401 = sbr.rel (0) target = $region21
  $region20: #{moe_gate.1} parent=0 // pred_region
    _
  $region21: #{moe_gate.1} parent=0 // pred_fallthru
    _
  // Predicated region
  $region22: #{moe_gate.1} parent=0 // pred_check
    _
  $region23: #{moe_gate.1} parent=0 // pred_check_branch
    %403 = sbr.rel (0) target = $region25
  $region24: #{moe_gate.1} parent=0 // pred_region
    _
  $region25: #{moe_gate.1} parent=0 // pred_fallthru
    _

</llo_original>
